<compile_context>
chip_gen: v5e
topology: v5e:2x2
jax: 0.10.0
libtpu: 0.0.40
codegen_flags: <defaults>
</compile_context>

<pallas_src>
import jax
import jax.numpy as jnp
from jax.experimental import pallas as pl
from jax.experimental.pallas import tpu as pltpu


# ---------------------------------------------------------------------------
# Pallas kernel: fused Linear -> (Dropout) -> ReLU -> Linear -> (Dropout) + residual
# ---------------------------------------------------------------------------
def _ffn_kernel(x_ref, w1_ref, b1_ref, w2_ref, b2_ref, o_ref):
    # x_ref : (TM, D)  native dtype (f32 or bf16)
    # w1_ref: (D, H)   native dtype;  b1_ref: (1, H) f32
    # w2_ref: (H, D)   native dtype;  b2_ref: (1, D) f32
    x = x_ref[...]

    # Matmul 1: native-dtype operands straight to the MXU, f32 accumulation.
    h = jnp.dot(x, w1_ref[...], preferred_element_type=jnp.float32)
    h = jnp.maximum(h + b1_ref[...], 0.0)            # bias + ReLU (VPU, f32)

    # Matmul 2: cast activation to the weight dtype (no-op for f32 weights)
    # so bf16 weights keep the bf16 x bf16 -> f32 MXU path.
    y = jnp.dot(h.astype(w2_ref.dtype), w2_ref[...],
                preferred_element_type=jnp.float32)
    y = y + b2_ref[...]

    # Residual add in f32, single cast back to the output dtype.
    o_ref[...] = (x.astype(jnp.float32) + y).astype(o_ref.dtype)


def _sublane(dtype):
    return {4: 8, 2: 16, 1: 32}[jnp.dtype(dtype).itemsize]


def _default_tile_m(n_rows, sublane):
    # 256-512 rows keeps the f32 (tile_m, H) intermediate small, amortizes the
    # ~0.35us/step grid overhead and lets x/out tiles double-buffer.  Halve on
    # v7x (64 MiB VMEM, and 2 TensorCores want >=2 grid steps).
    tile = 512
    try:
        kind = jax.devices()[0].device_kind.lower()
        if any(tag in kind for tag in ("v7", "tpu7", "7x")):
            tile = 256
    except Exception:
        pass
    rounded_n = ((n_rows + sublane - 1) // sublane) * sublane
    return min(tile, max(sublane, rounded_n))


def pointwise_feed_forward(inputs, w1, b1, w2, b2, *, tile_m=None):
    """inputs: (..., D). w1: (D, H), b1: (H,), w2: (H, D), b2: (D,).

    Weights use the (in, out) layout, i.e. the transpose of torch.nn.Linear's
    (out, in) weight.  Note: real encoder dims (>=128) give lane-dense stores;
    tiny D (e.g. 32) is latency / masked-store bound by construction.
    """
    orig_shape = inputs.shape
    D = orig_shape[-1]
    H = w1.shape[1]
    assert w1.shape == (D, H) and w2.shape == (H, D)

    x2d = inputs.reshape(-1, D)
    N = x2d.shape[0]

    sub = _sublane(inputs.dtype)
    if tile_m is None:
        tile_m = _default_tile_m(N, sub)
    assert tile_m % sub == 0, (
        f"tile_m={tile_m} must be a multiple of the sublane pack ({sub}) "
        f"for dtype {inputs.dtype}")

    # Pad the row dim so the grid divides evenly; padded rows are sliced off.
    n_pad = ((N + tile_m - 1) // tile_m) * tile_m
    if n_pad != N:
        x2d = jnp.pad(x2d, ((0, n_pad - N), (0, 0)))

    b1_2d = b1.reshape(1, H).astype(jnp.float32)
    b2_2d = b2.reshape(1, D).astype(jnp.float32)

    grid = (n_pad // tile_m,)

    # VMEM budget: double-buffered x/out tiles, (conservatively) double-
    # buffered resident weights, f32 intermediates.  Only raise the scoped
    # limit when the defaults would not fit.
    x_bytes = jnp.dtype(inputs.dtype).itemsize
    w_bytes = jnp.dtype(w1.dtype).itemsize
    vmem_need = (2 * tile_m * D * x_bytes            # x tiles (double-buffered)
                 + 2 * tile_m * D * x_bytes          # out tiles (double-buffered)
                 + 2 * (D * H + H * D) * w_bytes     # w1 + w2 resident
                 + 2 * (H + D) * 4                   # biases
                 + tile_m * H * 4 + tile_m * D * 4)  # f32 intermediates
    compiler_kwargs = dict(dimension_semantics=("parallel",))
    if vmem_need > 24 * 1024 * 1024:
        compiler_kwargs["vmem_limit_bytes"] = int(
            min(vmem_need * 5 // 4, 96 * 1024 * 1024))

    cost = pl.CostEstimate(
        flops=int(4 * n_pad * D * H),                # two (N,D,H) matmuls
        transcendentals=0,
        bytes_accessed=int(2 * n_pad * D * x_bytes   # read x + write out
                           + 2 * D * H * w_bytes     # w1 + w2
                           + (H + D) * 4),           # biases
    )

    out = pl.pallas_call(
        _ffn_kernel,
        out_shape=jax.ShapeDtypeStruct((n_pad, D), inputs.dtype),
        grid_spec=pltpu.PrefetchScalarGridSpec(
            num_scalar_prefetch=0,
            grid=grid,
            in_specs=[
                pl.BlockSpec((tile_m, D), lambda i: (i, 0)),   # x rows (streamed)
                pl.BlockSpec((D, H), lambda i: (0, 0)),        # w1 (resident)
                pl.BlockSpec((1, H), lambda i: (0, 0)),        # b1
                pl.BlockSpec((H, D), lambda i: (0, 0)),        # w2 (resident)
                pl.BlockSpec((1, D), lambda i: (0, 0)),        # b2
            ],
            out_specs=pl.BlockSpec((tile_m, D), lambda i: (i, 0)),
        ),
        compiler_params=pltpu.CompilerParams(**compiler_kwargs),
        cost_estimate=cost,
    )(x2d, w1, b1_2d, w2, b2_2d)

    if n_pad != N:
        out = out[:N]
    return out.reshape(orig_shape)


# ---------------------------------------------------------------------------
# Pure-JAX pieces of the TransformerEncoder (eval mode)
# TODO(synk): attention, LayerNorm, pre-layer and positional embedding are
#             plain JAX/XLA here, not fused Pallas kernels.
# ---------------------------------------------------------------------------
def _ffn_reference(x, w1, b1, w2, b2):
    h = jnp.maximum(jnp.dot(x, w1, preferred_element_type=jnp.float32)
                    + b1.astype(jnp.float32), 0.0)
    y = (jnp.dot(h.astype(w2.dtype), w2, preferred_element_type=jnp.float32)
         + b2.astype(jnp.float32))
    return (x.astype(jnp.float32) + y).astype(x.dtype)


def _layer_norm(x, gamma, beta, eps=1e-8):
    mean = jnp.mean(x, axis=-1, keepdims=True)
    var = jnp.mean(jnp.square(x - mean), axis=-1, keepdims=True)
    return (x - mean) * jax.lax.rsqrt(var + eps) * gamma + beta


def _multihead_attention(q_in, kv_in, in_w, in_b, out_w, out_b, num_heads, attn_mask):
    B, S, E = q_in.shape
    dh = E // num_heads
    w_q, w_k, w_v = jnp.split(in_w, 3, axis=0)      # torch (out, in) layout
    b_q, b_k, b_v = jnp.split(in_b, 3, axis=0)
    q = q_in @ w_q.T + b_q
    k = kv_in @ w_k.T + b_k
    v = kv_in @ w_v.T + b_v
    split = lambda t: t.reshape(B, S, num_heads, dh).transpose(0, 2, 1, 3)
    q, k, v = split(q), split(k), split(v)
    scores = jnp.einsum("bhqd,bhkd->bhqk", q, k) / jnp.sqrt(jnp.asarray(dh, jnp.float32))
    scores = jnp.where(attn_mask[None, None], -jnp.inf, scores)
    probs = jax.nn.softmax(scores, axis=-1)
    ctx = jnp.einsum("bhqk,bhkd->bhqd", probs, v)
    ctx = ctx.transpose(0, 2, 1, 3).reshape(B, S, E)
    return ctx @ out_w.T + out_b


def init_encoder_params(key, input_size, embed_size, hidden_size, time_len, num_blocks):
    def uniform(k, shape, fan_in):
        bound = 1.0 / (fan_in ** 0.5)
        return jax.random.uniform(k, shape, jnp.float32, -bound, bound)

    keys = iter(jax.random.split(key, 3 + 8 * num_blocks))
    params = {
        "pre_w": uniform(next(keys), (embed_size, input_size), input_size),
        "pre_b": uniform(next(keys), (embed_size,), input_size),
        "pos_emb": jax.random.normal(next(keys), (time_len, embed_size), jnp.float32),
        "lnf_g": jnp.ones((embed_size,), jnp.float32),
        "lnf_b": jnp.zeros((embed_size,), jnp.float32),
        "blocks": [],
    }
    for _ in range(num_blocks):
        params["blocks"].append({
            "ln1_g": jnp.ones((embed_size,), jnp.float32),
            "ln1_b": jnp.zeros((embed_size,), jnp.float32),
            "attn_in_w": uniform(next(keys), (3 * embed_size, embed_size), embed_size),
            "attn_in_b": uniform(next(keys), (3 * embed_size,), embed_size),
            "attn_out_w": uniform(next(keys), (embed_size, embed_size), embed_size),
            "attn_out_b": uniform(next(keys), (embed_size,), embed_size),
            "ln2_g": jnp.ones((embed_size,), jnp.float32),
            "ln2_b": jnp.zeros((embed_size,), jnp.float32),
            # FFN weights in (in, out) layout for the Pallas kernel.
            "w1": uniform(next(keys), (embed_size, hidden_size), embed_size),
            "b1": uniform(next(keys), (hidden_size,), embed_size),
            "w2": uniform(next(keys), (hidden_size, embed_size), hidden_size),
            "b2": uniform(next(keys), (embed_size,), hidden_size),
        })
    return params


def transformer_encoder_forward(params, x, num_heads, *, use_pallas_ffn=True):
    # timeline mask is computed from the RAW observations (before pre_layer)
    timeline_mask = (jnp.sum(x, axis=-1) != 0).astype(x.dtype)[..., None]   # (B,S,1)
    h = x @ params["pre_w"].T + params["pre_b"]
    S = h.shape[1]
    h = h + params["pos_emb"][:S][None]             # embed_dropout == identity
    h = h * timeline_mask
    attn_mask = ~jnp.tril(jnp.ones((S, S), dtype=bool))   # True = blocked (causal)
    ffn = pointwise_feed_forward if use_pallas_ffn else _ffn_reference
    for blk in params["blocks"]:
        q = _layer_norm(h, blk["ln1_g"], blk["ln1_b"])
        attn_out = _multihead_attention(q, h, blk["attn_in_w"], blk["attn_in_b"],
                                        blk["attn_out_w"], blk["attn_out_b"],
                                        num_heads, attn_mask)
        h = q + attn_out
        h = _layer_norm(h, blk["ln2_g"], blk["ln2_b"])
        h = ffn(h, blk["w1"], blk["b1"], blk["w2"], blk["b2"])
        h = h * timeline_mask
    h = _layer_norm(h, params["lnf_g"], params["lnf_b"])
    return h[:, -1, :]


if __name__ == "__main__":
    key = jax.random.PRNGKey(0)
    k_x, k_p, k_enc, k_obs, k_big = jax.random.split(key, 5)

    # --- 1) Standalone FFN kernel check at the module's small scale (f32) ----
    B, S, E, H = 2, 8, 32, 64
    x = jax.random.normal(k_x, (B, S, E), jnp.float32)
    kp = jax.random.split(k_p, 4)
    w1 = jax.random.uniform(kp[0], (E, H), jnp.float32, -E ** -0.5, E ** -0.5)
    b1 = jax.random.uniform(kp[1], (H,), jnp.float32, -E ** -0.5, E ** -0.5)
    w2 = jax.random.uniform(kp[2], (H, E), jnp.float32, -H ** -0.5, H ** -0.5)
    b2 = jax.random.uniform(kp[3], (E,), jnp.float32, -H ** -0.5, H ** -0.5)
    out = jax.block_until_ready(pointwise_feed_forward(x, w1, b1, w2, b2))
    ref = _ffn_reference(x, w1, b1, w2, b2)
    assert out.shape == x.shape
    assert jnp.allclose(out, ref, atol=1e-5, rtol=1e-5), "f32 FFN mismatch"

    # --- 2) bf16, multi-step grid + row-padding path (exercises pipelining) --
    kb = jax.random.split(k_big, 5)
    Db, Hb = 128, 256
    xb = jax.random.normal(kb[0], (4, 250, Db), jnp.float32).astype(jnp.bfloat16)
    w1b = jax.random.uniform(kb[1], (Db, Hb), jnp.float32,
                             -Db ** -0.5, Db ** -0.5).astype(jnp.bfloat16)
    b1b = jax.random.uniform(kb[2], (Hb,), jnp.float32, -Db ** -0.5, Db ** -0.5)
    w2b = jax.random.uniform(kb[3], (Hb, Db), jnp.float32,
                             -Hb ** -0.5, Hb ** -0.5).astype(jnp.bfloat16)
    b2b = jax.random.uniform(kb[4], (Db,), jnp.float32, -Hb ** -0.5, Hb ** -0.5)
    out_b = jax.block_until_ready(
        pointwise_feed_forward(xb, w1b, b1b, w2b, b2b, tile_m=256))
    ref_b = (xb.astype(jnp.float32)
             + (jnp.maximum(xb.astype(jnp.float32) @ w1b.astype(jnp.float32) + b1b, 0.0)
                @ w2b.astype(jnp.float32))
             + b2b)
    assert out_b.shape == xb.shape
    assert jnp.allclose(out_b.astype(jnp.float32), ref_b, atol=1e-1, rtol=1e-1), \
        "bf16 FFN mismatch"

    # --- 3) Full TransformerEncoder forward (Pallas FFN inside) vs pure JAX --
    input_size, time_len, num_blocks, num_heads = 12, 8, 2, 2
    obs = jax.random.normal(k_obs, (B, time_len, input_size), jnp.float32)
    obs = obs.at[0, 0].set(0.0)          # exercise the timeline mask
    params = init_encoder_params(k_enc, input_size, E, H, time_len, num_blocks)
    enc_out = jax.block_until_ready(
        transformer_encoder_forward(params, obs, num_heads, use_pallas_ffn=True))
    enc_ref = transformer_encoder_forward(params, obs, num_heads, use_pallas_ffn=False)
    assert enc_out.shape == (B, E)
    assert jnp.allclose(enc_out, enc_ref, atol=1e-4, rtol=1e-4), "encoder mismatch"

    print("KERNEL_OK")
</pallas_src>

<mosaic_0001>
module attributes {stable_mosaic.version = 11 : i64} {
  func.func @_ffn_kernel(%arg0: i32, %arg1: memref<16x32xf32, #tpu.memory_space<vmem>>, %arg2: memref<32x64xf32, #tpu.memory_space<vmem>>, %arg3: memref<1x64xf32, #tpu.memory_space<vmem>>, %arg4: memref<64x32xf32, #tpu.memory_space<vmem>>, %arg5: memref<1x32xf32, #tpu.memory_space<vmem>>, %arg6: memref<16x32xf32, #tpu.memory_space<vmem>>) attributes {dimension_semantics = [#tpu.dimension_semantics<parallel>], iteration_bounds = array<i64: 1>, scalar_prefetch = 0 : i64, scratch_operands = 0 : i64, tpu.core_type = #tpu.core_type<tc>, window_params = [{transform_indices = @transform_0, window_bounds = array<i64: 16, 32>}, {pipeline_mode = #tpu.pipeline_mode<synchronous>, transform_indices = @transform_1, window_bounds = array<i64: 32, 64>}, {pipeline_mode = #tpu.pipeline_mode<synchronous>, transform_indices = @transform_2, window_bounds = array<i64: 1, 64>}, {pipeline_mode = #tpu.pipeline_mode<synchronous>, transform_indices = @transform_3, window_bounds = array<i64: 64, 32>}, {pipeline_mode = #tpu.pipeline_mode<synchronous>, transform_indices = @transform_4, window_bounds = array<i64: 1, 32>}, {transform_indices = @transform_5, window_bounds = array<i64: 16, 32>}]} {
    %c0 = arith.constant 0 : index
    %c0_0 = arith.constant 0 : index
    %0 = vector.load %arg1[%c0, %c0_0] : memref<16x32xf32, #tpu.memory_space<vmem>>, vector<16x32xf32>
    %c0_1 = arith.constant 0 : index
    %c0_2 = arith.constant 0 : index
    %1 = vector.load %arg2[%c0_1, %c0_2] : memref<32x64xf32, #tpu.memory_space<vmem>>, vector<32x64xf32>
    %cst = arith.constant dense<0.000000e+00> : vector<16x64xf32>
    %2 = tpu.matmul %0, %1, %cst {dimension_numbers = #tpu.dot_dimension_numbers<[1], [0], [0], [1], [0, 0, 1, 1], [], []>} : vector<16x32xf32>, vector<32x64xf32>, vector<16x64xf32> -> vector<16x64xf32>
    %c0_3 = arith.constant 0 : index
    %c0_4 = arith.constant 0 : index
    %3 = vector.load %arg3[%c0_3, %c0_4] : memref<1x64xf32, #tpu.memory_space<vmem>>, vector<1x64xf32>
    %4 = vector.broadcast %3 : vector<1x64xf32> to vector<16x64xf32>
    %5 = arith.addf %2, %4 : vector<16x64xf32>
    %cst_5 = arith.constant 0.000000e+00 : f32
    %6 = vector.broadcast %cst_5 : f32 to vector<16x64xf32>
    %7 = arith.maximumf %5, %6 : vector<16x64xf32>
    %c0_6 = arith.constant 0 : index
    %c0_7 = arith.constant 0 : index
    %8 = vector.load %arg4[%c0_6, %c0_7] : memref<64x32xf32, #tpu.memory_space<vmem>>, vector<64x32xf32>
    %cst_8 = arith.constant dense<0.000000e+00> : vector<16x32xf32>
    %9 = tpu.matmul %7, %8, %cst_8 {dimension_numbers = #tpu.dot_dimension_numbers<[1], [0], [0], [1], [0, 0, 1, 1], [], []>} : vector<16x64xf32>, vector<64x32xf32>, vector<16x32xf32> -> vector<16x32xf32>
    %c0_9 = arith.constant 0 : index
    %c0_10 = arith.constant 0 : index
    %10 = vector.load %arg5[%c0_9, %c0_10] : memref<1x32xf32, #tpu.memory_space<vmem>>, vector<1x32xf32>
    %11 = vector.broadcast %10 : vector<1x32xf32> to vector<16x32xf32>
    %12 = arith.addf %9, %11 : vector<16x32xf32>
    %13 = arith.addf %0, %12 : vector<16x32xf32>
    %c0_11 = arith.constant 0 : index
    %c0_12 = arith.constant 0 : index
    %14 = vector.load %arg6[%c0_11, %c0_12] : memref<16x32xf32, #tpu.memory_space<vmem>>, vector<16x32xf32>
    tpu.vector_store %arg6[%c0_11, %c0_12], %13 {strides = array<i32>} : memref<16x32xf32, #tpu.memory_space<vmem>>, vector<16x32xf32>,
    return
  }
  func.func @transform_0(%arg0: i32) -> (i32, i32) {
    %c0_i32 = arith.constant 0 : i32
    %c0_i32_0 = arith.constant 0 : i32
    return %arg0, %c0_i32 : i32, i32
  }
  func.func @transform_1(%arg0: i32) -> (i32, i32) {
    %c0_i32 = arith.constant 0 : i32
    %c0_i32_0 = arith.constant 0 : i32
    %c0_i32_1 = arith.constant 0 : i32
    return %c0_i32, %c0_i32_0 : i32, i32
  }
  func.func @transform_2(%arg0: i32) -> (i32, i32) {
    %c0_i32 = arith.constant 0 : i32
    %c0_i32_0 = arith.constant 0 : i32
    %c0_i32_1 = arith.constant 0 : i32
    return %c0_i32, %c0_i32_0 : i32, i32
  }
  func.func @transform_3(%arg0: i32) -> (i32, i32) {
    %c0_i32 = arith.constant 0 : i32
    %c0_i32_0 = arith.constant 0 : i32
    %c0_i32_1 = arith.constant 0 : i32
    return %c0_i32, %c0_i32_0 : i32, i32
  }
  func.func @transform_4(%arg0: i32) -> (i32, i32) {
    %c0_i32 = arith.constant 0 : i32
    %c0_i32_0 = arith.constant 0 : i32
    %c0_i32_1 = arith.constant 0 : i32
    return %c0_i32, %c0_i32_0 : i32, i32
  }
  func.func @transform_5(%arg0: i32) -> (i32, i32) {
    %c0_i32 = arith.constant 0 : i32
    %c0_i32_0 = arith.constant 0 : i32
    return %arg0, %c0_i32 : i32, i32
  }
}

</mosaic_0001>

<llo_original>
// kernel: tpu_custom_call.1
$region0: #{tpu_custom_call.1}
  #allocation0 [shape = 'u32[]', space=smem, size = 0x4, offset = 0x4, fixed_abs, tag = 'smem constant byte address 0x4 - core index']
  #allocation1 [shape = 'u32[72,128]{1,0:T(1,128)}', space=vmem, size = 0x9000, scoped, tag = 'internal scratch']
  %s0 = inlined_call_operand.vmem [shape: f32[16,32], index: 0, kind: input, shape index: {}]
  %s1 = inlined_call_operand.vmem [shape: f32[32,64], index: 1, kind: input, shape index: {}]
  %s2 = inlined_call_operand.vmem [shape: f32[1,64], index: 2, kind: input, shape index: {}]
  %s3 = inlined_call_operand.vmem [shape: f32[64,32], index: 3, kind: input, shape index: {}]
  %s4 = inlined_call_operand.vmem [shape: f32[1,32], index: 4, kind: input, shape index: {}]
  %s5 = inlined_call_operand.hbm [shape: f32[16,32], index: 5, kind: output, shape index: {}]
  %s6 = sld [smem:[#allocation0]]
  $region30: #{tpu_custom_call.1} parent=0
    _
  %s8 = ssub.s32 1, %s6
  %s9 = scalar_select 0, %s8, %s6
  $region1: #{tpu_custom_call.1} parent=0
    #allocation2 [shape = 'u8[8192]{0}', space=vmem, size = 0x2000, scoped, tag = 'output window, operand 0, single buffered']
    #allocation3 [shape = 's32[1]{0}', space=sflag, size = 0x4, scoped, tag = 'scoped memory for tpu_custom_call.1']
    %10 = vsyncpa [#allocation3], 0
    // Predicated region
    $region2: #{tpu_custom_call.1} parent=1 // pred_check
      _
    $region3: #{tpu_custom_call.1} parent=1 // pred_check_branch
      %12 = sbr.rel (0) target = $region5
    $region4: #{tpu_custom_call.1} parent=1 // pred_region
      _
    $region5: #{tpu_custom_call.1} parent=1 // pred_fallthru
      _
    // Predicated region
    $region6: #{tpu_custom_call.1} parent=1 // pred_check
      _
    $region7: #{tpu_custom_call.1} parent=1 // pred_check_branch
      %14 = sbr.rel (0) target = $region9
    $region8: #{tpu_custom_call.1} parent=1 // pred_region
      _
    $region9: #{tpu_custom_call.1} parent=1 // pred_fallthru
      _
    // Predicated region
    $region10: #{tpu_custom_call.1} parent=1 // pred_check
      _
    $region11: #{tpu_custom_call.1} parent=1 // pred_check_branch
      %16 = sbr.rel (0) target = $region13
    $region12: #{tpu_custom_call.1} parent=1 // pred_region
      _
    $region13: #{tpu_custom_call.1} parent=1 // pred_fallthru
      _
    // Predicated region
    $region14: #{tpu_custom_call.1} parent=1 // pred_check
      _
    $region15: #{tpu_custom_call.1} parent=1 // pred_check_branch
      %18 = sbr.rel (0) target = $region17
    $region16: #{tpu_custom_call.1} parent=1 // pred_region
      _
    $region17: #{tpu_custom_call.1} parent=1 // pred_fallthru
      _
    // Predicated region
    $region18: #{tpu_custom_call.1} parent=1 // pred_check
      _
    $region19: #{tpu_custom_call.1} parent=1 // pred_check_branch
      %20 = sbr.rel (0) target = $region21
    $region20: #{tpu_custom_call.1} parent=1 // pred_region
      _
    $region21: #{tpu_custom_call.1} parent=1 // pred_fallthru
      _
    %v21 = vld [vmem:[%s0] sm:$0xff]
    %v22 = vld [vmem:[%s0 + $0x8] sm:$0xff]
    %v23 = vld [vmem:[%s1] sm:$0xff]
    %v24 = vld [vmem:[%s1 + $0x8] sm:$0xff]
    %v25 = vld [vmem:[%s1 + $0x10] sm:$0xff]
    %v26 = vld [vmem:[%s1 + $0x18] sm:$0xff]
    %v27 = vld [vmem:[%s2] sm:$0x1]
    %v29 = vperm.slane %v27, 0
    %vm31 = vcmask 261120
    %v33 = vsel %vm31, %v21, 0
    %v36 = vsel %vm31, %v22, 0
    %38 = vmatpush.msra.mxu0 0.0
    %39 = vmatpush.msra.mxu0 0.0
    %40 = vmatpush.msra.mxu0 0.0
    %41 = vmatpush.msra.mxu0 0.0
    %42 = vmatpush.msra.mxu0 0.0
    %43 = vmatpush.msra.mxu0 0.0
    %44 = vmatpush.msra.mxu0 0.0
    %45 = vmatpush.msra.mxu0 0.0
    %46 = vmatpush.msra.mxu0 0.0
    %47 = vmatpush.msra.mxu0 0.0
    %48 = vmatpush.msra.mxu0 0.0
    %49 = vmatpush.msra.mxu0 0.0
    %50 = vmatpush.msra.mxu0 %v26
    %51 = vmatpush.msra.mxu0 %v25
    %52 = vmatpush.msra.mxu0 %v24
    %53 = vmatpush.msra.mxu0 %v23
    %54 = vmatmul.f32.gmra.mxu0 %v33
    %v55 = vpop.f32.mrf.mxu0
    %v56 = vadd.f32 %v29, %v55
    %57 = vmatmul.f32.gmra.mxu0 %v36
    %v58 = vpop.f32.mrf.mxu0
    %v59 = vadd.f32 %v29, %v58
    %60 = vdwg.mxu0
    %v61 = vmax.f32 %v56, 0.0
    %v62 = vmax.f32 %v59, 0.0
    %v63 = vld [vmem:[%s3] sm:$0xff]
    %v64 = vld [vmem:[%s3 + $0x8] sm:$0xff]
    %v65 = vld [vmem:[%s3 + $0x10] sm:$0xff]
    %v66 = vld [vmem:[%s3 + $0x18] sm:$0xff]
    %v67 = vld [vmem:[%s3 + $0x20] sm:$0xff]
    %v68 = vld [vmem:[%s3 + $0x28] sm:$0xff]
    %v69 = vld [vmem:[%s3 + $0x30] sm:$0xff]
    %v70 = vld [vmem:[%s3 + $0x38] sm:$0xff]
    %v71 = vld [vmem:[%s4] sm:$0x1]
    %v73 = vperm.slane %v71, 0
    %vm75 = vcmask 523264
    %v77 = vsel %vm75, %v61, 0
    %v80 = vsel %vm75, %v62, 0
    %82 = vmatpush.msra.mxu0 0.0
    %83 = vmatpush.msra.mxu0 0.0
    %84 = vmatpush.msra.mxu0 0.0
    %85 = vmatpush.msra.mxu0 0.0
    %86 = vmatpush.msra.mxu0 0.0
    %87 = vmatpush.msra.mxu0 0.0
    %88 = vmatpush.msra.mxu0 0.0
    %89 = vmatpush.msra.mxu0 0.0
    %90 = vmatpush.msra.mxu0 %v70
    %91 = vmatpush.msra.mxu0 %v69
    %92 = vmatpush.msra.mxu0 %v68
    %93 = vmatpush.msra.mxu0 %v67
    %94 = vmatpush.msra.mxu0 %v66
    %95 = vmatpush.msra.mxu0 %v65
    %96 = vmatpush.msra.mxu0 %v64
    %97 = vmatpush.msra.mxu0 %v63
    %98 = vmatmul.f32.gmra.mxu0 %v77
    %v99 = vpop.f32.mrf.mxu0
    %v100 = vadd.f32 %v73, %v99
    %101 = vmatmul.f32.gmra.mxu0 %v80
    %v102 = vpop.f32.mrf.mxu0
    %v103 = vadd.f32 %v73, %v102
    %104 = vdwg.mxu0
    %v105 = vadd.f32 %v21, %v100
    %v106 = vadd.f32 %v22, %v103
    %107 = vst.msk [vmem:[#allocation2] sm:$0xff] %vm31, %v105
    %108 = vst.msk [vmem:[#allocation2 + $0x8] sm:$0xff] %vm31, %v106
    // Predicated region
    $region22: #{tpu_custom_call.1} parent=1 // pred_check
      _
    $region23: #{tpu_custom_call.1} parent=1 // pred_check_branch
      %110 = sbr.rel (0) target = $region25
    $region24: #{tpu_custom_call.1} parent=1 // pred_region
      %112 = vsyncadd [#allocation3], 0
      %s113 = sshll.u32 [#allocation2], 4
      %s114 = int_to_ptr.vmem [resolvable:$true] %s113
      %s115 = sshll.u32 %s5, 4
      %s116 = int_to_ptr.hbm [resolvable:$true] %s115
      %121 = dma.vmem_to_hbm [thread:$0]  %s114, 256, %s116, [#allocation3], 128, 128, 8
    $region25: #{tpu_custom_call.1} parent=1 // pred_fallthru
      _
    // Predicated region
    $region26: #{tpu_custom_call.1} parent=1 // pred_check
      _
    $region27: #{tpu_custom_call.1} parent=1 // pred_check_branch
      %123 = sbr.rel (0) target = $region29
    $region28: #{tpu_custom_call.1} parent=1 // pred_region
      %125 = dma.done [#allocation3], 256
    $region29: #{tpu_custom_call.1} parent=1 // pred_fallthru
      _
    %126 = vsyncpa [#allocation3], 1

</llo_original>
